<compile_context>
chip_gen: v7x
topology: tpu7x:2x2x1
jax: 0.10.0
libtpu: 0.0.40
codegen_flags: <defaults>
</compile_context>

<pallas_src>
import jax
import jax.numpy as jnp
from jax.experimental import pallas as pl
from jax.experimental.pallas import tpu as pltpu

_LANE = 128
_MAX_TILE_LANES = 16384        # beyond this, per-grid-step overhead is already <~3%
_SMALL_STEP_TARGET = 4 << 20   # aim for >= ~4 MiB streamed per grid step (small-hw path)


def _vmem_plan():
    """Return (block_sizing_budget_bytes, scoped_vmem_limit_bytes) for this chip."""
    try:
        phys = int(getattr(pltpu.get_tpu_info(), "vmem_capacity_bytes"))
    except Exception:
        phys = 64 << 20  # conservative fallback (v7x per-TC physical VMEM)
    # Scoped limit: leave headroom under physical for compiler-internal scratch.
    #   v7x (64 MiB phys)  -> 48 MiB limit;  v5e/v6e (128 MiB phys) -> 96 MiB limit.
    limit = max(32 << 20, min(phys - (16 << 20), 96 << 20))
    # Sizing budget: margin under the scoped limit.
    budget = int(limit * 0.75)
    return budget, limit


def _choose_hw_tile(hw, c, cout, x_item, k_item, o_item, budget):
    """Lane-dense hw tile sized from the VMEM budget.

    x and out blocks are double-buffered, K block (resident) is double-buffered:
        2*(c*x_item + cout*o_item)*t + 2*cout*c*k_item <= budget
    Rounded down to a multiple of 128, capped, then rebalanced so all tiles in
    a batch are (near-)equal and the last one is not a tiny ragged sliver.
    """
    per_lane = 2 * (c * x_item + cout * o_item)
    k_bytes = 2 * cout * c * k_item
    t = max(_LANE, (budget - k_bytes) // max(per_lane, 1))
    t = min(t, _MAX_TILE_LANES)
    if hw <= t:
        return hw  # full extent is always a legal block (even if hw % 128 != 0)
    t = max(_LANE, (t // _LANE) * _LANE)
    # Rebalance: same number of tiles, equalized widths (<= t, multiple of 128).
    num = (hw + t - 1) // t
    per = (hw + num - 1) // num
    t = ((per + _LANE - 1) // _LANE) * _LANE
    return max(_LANE, t)


def _choose_batch_tile(n, hw, c, cout, x_item, k_item, o_item, budget):
    """Batch tile for the small-hw path: keep per-step DMAs large, fit VMEM."""
    per_batch = (c * x_item + cout * o_item) * hw + cout * c * k_item
    bt_cap = max(1, budget // (2 * per_batch))          # double-buffered
    bt_want = max(1, (_SMALL_STEP_TARGET + per_batch - 1) // per_batch)
    bt = int(min(n, bt_cap, bt_want))
    # Prefer an even divisor of n (no ragged/masked final batch tile) if one
    # exists reasonably close below bt.
    for cand in range(bt, max(1, bt // 2) - 1, -1):
        if n % cand == 0:
            return cand
    return bt


def _pwdp_kernel(x_ref, k_ref, o_ref):
    # x_ref: (c, t_hw)   k_ref: (cout, c)   o_ref: (cout, t_hw)
    o_ref[...] = jnp.dot(
        k_ref[...], x_ref[...], preferred_element_type=jnp.float32
    ).astype(o_ref.dtype)


def _pwdp_kernel_batched(x_ref, k_ref, o_ref):
    # x_ref: (bt, c, hw)  k_ref: (bt, cout, c)  o_ref: (bt, cout, hw)
    o_ref[...] = jnp.einsum(
        "boc,bcs->bos",
        k_ref[...],
        x_ref[...],
        preferred_element_type=jnp.float32,
    ).astype(o_ref.dtype)


def pixel_wise_dot_product(x, K):
    """x: (n, c, h, w), K: (n, cout, c) -> (n, cout, h, w)."""
    n, c, h, w = x.shape
    _, cout, ck = K.shape
    assert c == ck, (
        "Number of channels in x and Embedding dimension (at dim 2) of K "
        "matrix must match"
    )
    hw = h * w
    x_flat = x.reshape(n, c, hw)
    out_dtype = jnp.promote_types(x.dtype, K.dtype)

    x_item = jnp.dtype(x.dtype).itemsize
    k_item = jnp.dtype(K.dtype).itemsize
    o_item = jnp.dtype(out_dtype).itemsize

    budget, vmem_limit = _vmem_plan()
    t_hw = _choose_hw_tile(hw, c, cout, x_item, k_item, o_item, budget)

    cost = pl.CostEstimate(
        flops=2 * n * cout * c * hw,
        transcendentals=0,
        bytes_accessed=n
        * (c * hw * x_item + cout * c * k_item + cout * hw * o_item),
    )

    if t_hw >= hw:
        # ---- Small-hw path: full spatial extent per block; fold batches so
        # each grid step streams a few MiB (amortizes the ~0.35 us step cost).
        bt = _choose_batch_tile(n, hw, c, cout, x_item, k_item, o_item, budget)
        num_b = pl.cdiv(n, bt)
        out_flat = pl.pallas_call(
            _pwdp_kernel_batched,
            out_shape=jax.ShapeDtypeStruct((n, cout, hw), out_dtype),
            grid_spec=pltpu.PrefetchScalarGridSpec(
                num_scalar_prefetch=0,
                grid=(num_b,),
                in_specs=[
                    pl.BlockSpec((bt, c, hw), lambda b: (b, 0, 0)),
                    pl.BlockSpec((bt, cout, c), lambda b: (b, 0, 0)),
                ],
                out_specs=pl.BlockSpec((bt, cout, hw), lambda b: (b, 0, 0)),
            ),
            compiler_params=pltpu.CompilerParams(
                dimension_semantics=("parallel",),
                vmem_limit_bytes=vmem_limit,
            ),
            cost_estimate=cost,
        )(x_flat, K)
    else:
        # ---- Large-hw path: tile the spatial axis; one MXU matmul per step.
        num_hw = pl.cdiv(hw, t_hw)
        if num_hw >= n:
            # Larger axis leads -> megacore (v7x) splits the hw-tile axis even
            # when n == 1.  K is re-fetched per step, but it is tiny (cout*c)
            # relative to the multi-MiB x/out tiles.
            grid = (num_hw, n)
            x_map = lambda t, b: (b, 0, t)
            k_map = lambda t, b: (b, 0, 0)
            o_map = lambda t, b: (b, 0, t)
        else:
            # Batch axis leads; hw innermost -> K stays resident across the hw
            # steps of a batch (index_map is batch-only).
            grid = (n, num_hw)
            x_map = lambda b, t: (b, 0, t)
            k_map = lambda b, t: (b, 0, 0)
            o_map = lambda b, t: (b, 0, t)

        out_flat = pl.pallas_call(
            _pwdp_kernel,
            out_shape=jax.ShapeDtypeStruct((n, cout, hw), out_dtype),
            grid_spec=pltpu.PrefetchScalarGridSpec(
                num_scalar_prefetch=0,
                grid=grid,
                in_specs=[
                    pl.BlockSpec((pl.Squeezed(), c, t_hw), x_map),
                    pl.BlockSpec((pl.Squeezed(), cout, c), k_map),
                ],
                out_specs=pl.BlockSpec((pl.Squeezed(), cout, t_hw), o_map),
            ),
            compiler_params=pltpu.CompilerParams(
                dimension_semantics=("parallel", "parallel"),
                vmem_limit_bytes=vmem_limit,
            ),
            cost_estimate=cost,
        )(x_flat, K)

    return out_flat.reshape(n, cout, h, w)


if __name__ == "__main__":
    key = jax.random.PRNGKey(0)
    kx, kk = jax.random.split(key)

    n, c, h, w = 2, 4, 16, 16
    cout = 8

    x = jax.random.normal(kx, (n, c, h, w), dtype=jnp.float32)
    K = jax.random.normal(kk, (n, cout, c), dtype=jnp.float32)

    out = pixel_wise_dot_product(x, K)
    out = jax.block_until_ready(out)

    # Reference check against plain JAX (mirrors the PyTorch matmul/permutes).
    ref = jnp.einsum("bcij,boc->boij", x, K)
    assert out.shape == (n, cout, h, w)
    assert jnp.allclose(out, ref, atol=1e-5, rtol=1e-5)

    print("KERNEL_OK")
</pallas_src>

<mosaic_0001>
module attributes {stable_mosaic.version = 11 : i64} {
  func.func @_pwdp_kernel_batched(%arg0: i32, %arg1: memref<2x4x256xf32, #tpu.memory_space<vmem>>, %arg2: memref<2x8x4xf32, #tpu.memory_space<vmem>>, %arg3: memref<2x8x256xf32, #tpu.memory_space<vmem>>) attributes {dimension_semantics = [#tpu.dimension_semantics<parallel>], iteration_bounds = array<i64: 1>, scalar_prefetch = 0 : i64, scratch_operands = 0 : i64, tpu.core_type = #tpu.core_type<tc>, window_params = [{transform_indices = @transform_0, window_bounds = array<i64: 2, 4, 256>}, {transform_indices = @transform_1, window_bounds = array<i64: 2, 8, 4>}, {transform_indices = @transform_2, window_bounds = array<i64: 2, 8, 256>}]} {
    %c0 = arith.constant 0 : index
    %c0_0 = arith.constant 0 : index
    %c0_1 = arith.constant 0 : index
    %0 = vector.load %arg2[%c0, %c0_0, %c0_1] : memref<2x8x4xf32, #tpu.memory_space<vmem>>, vector<2x8x4xf32>
    %c0_2 = arith.constant 0 : index
    %c0_3 = arith.constant 0 : index
    %c0_4 = arith.constant 0 : index
    %1 = vector.load %arg1[%c0_2, %c0_3, %c0_4] : memref<2x4x256xf32, #tpu.memory_space<vmem>>, vector<2x4x256xf32>
    "tpu.trace_start"() <{level = 10 : i32, message = "boc,bcs->bos"}> : () -> ()
    %cst = arith.constant dense<0.000000e+00> : vector<2x8x256xf32>
    %2 = tpu.matmul %0, %1, %cst {dimension_numbers = #tpu.dot_dimension_numbers<[2], [1], [1], [2], [0, 0, 0, 1, 1, 2], [0], [0]>} : vector<2x8x4xf32>, vector<2x4x256xf32>, vector<2x8x256xf32> -> vector<2x8x256xf32>
    "tpu.trace_stop"() : () -> ()
    %c0_5 = arith.constant 0 : index
    %c0_6 = arith.constant 0 : index
    %c0_7 = arith.constant 0 : index
    %3 = vector.load %arg3[%c0_5, %c0_6, %c0_7] : memref<2x8x256xf32, #tpu.memory_space<vmem>>, vector<2x8x256xf32>
    tpu.vector_store %arg3[%c0_5, %c0_6, %c0_7], %2 {strides = array<i32>} : memref<2x8x256xf32, #tpu.memory_space<vmem>>, vector<2x8x256xf32>,
    return
  }
  func.func @transform_0(%arg0: i32) -> (i32, i32, i32) {
    %c0_i32 = arith.constant 0 : i32
    %c0_i32_0 = arith.constant 0 : i32
    %c0_i32_1 = arith.constant 0 : i32
    return %arg0, %c0_i32, %c0_i32_0 : i32, i32, i32
  }
  func.func @transform_1(%arg0: i32) -> (i32, i32, i32) {
    %c0_i32 = arith.constant 0 : i32
    %c0_i32_0 = arith.constant 0 : i32
    %c0_i32_1 = arith.constant 0 : i32
    return %arg0, %c0_i32, %c0_i32_0 : i32, i32, i32
  }
  func.func @transform_2(%arg0: i32) -> (i32, i32, i32) {
    %c0_i32 = arith.constant 0 : i32
    %c0_i32_0 = arith.constant 0 : i32
    %c0_i32_1 = arith.constant 0 : i32
    return %arg0, %c0_i32, %c0_i32_0 : i32, i32, i32
  }
}

</mosaic_0001>

<llo_original>
// kernel: tpu_custom_call.1
$region0: #{tpu_custom_call.1}
  #allocation0 [shape = 'u32[]', space=smem, size = 0x4, offset = 0x4, fixed_abs, tag = 'smem constant byte address 0x4 - core index']
  #allocation1 [shape = 'u32[144,128]{1,0:T(1,128)}', space=vmem, size = 0x12000, scoped, tag = 'internal scratch']
  %s0 = inlined_call_operand.vmem [shape: f32[2,4,256], index: 0, kind: input, shape index: {}]
  %s1 = inlined_call_operand.vmem [shape: f32[2,8,4], index: 1, kind: input, shape index: {}]
  %s2 = inlined_call_operand.hbm [shape: f32[2,8,256], index: 2, kind: output, shape index: {}]
  %s3 = sld [smem:[#allocation0]]
  $region18: #{tpu_custom_call.1} parent=0
    _
  %s5 = ssub.s32 1, %s3
  %s6 = scalar_select 0, %s5, %s3
  $region1: #{tpu_custom_call.1} parent=0
    #allocation2 [shape = 'u8[16384]{0}', space=vmem, size = 0x4000, scoped, tag = 'output window, operand 0, single buffered']
    #allocation3 [shape = 's32[1]{0}', space=sflag, size = 0x4, scoped, tag = 'scoped memory for tpu_custom_call.1']
    %7 = vsyncpa [#allocation3], 0
    // Predicated region
    $region2: #{tpu_custom_call.1} parent=1 // pred_check
      _
    $region3: #{tpu_custom_call.1} parent=1 // pred_check_branch
      %9 = sbr.rel (0) target = $region5
    $region4: #{tpu_custom_call.1} parent=1 // pred_region
      _
    $region5: #{tpu_custom_call.1} parent=1 // pred_fallthru
      _
    // Predicated region
    $region6: #{tpu_custom_call.1} parent=1 // pred_check
      _
    $region7: #{tpu_custom_call.1} parent=1 // pred_check_branch
      %11 = sbr.rel (0) target = $region9
    $region8: #{tpu_custom_call.1} parent=1 // pred_region
      _
    $region9: #{tpu_custom_call.1} parent=1 // pred_fallthru
      _
    %v12 = vld [vmem:[%s1] sm:$0xff]
    %v13 = vld [vmem:[%s1 + $0x8] sm:$0xff]
    %v14 = vld [vmem:[%s0] sm:$0xff]
    %v15 = vld [vmem:[%s0 + $0x8] sm:$0xff]
    %v17 = vcombine.high %v14, %v14
    %vm18 = vcmask 31744
    %v20 = vsel %vm18, %v12, 0
    %vm22 = vcmask 1043456
    %v23 = vsel %vm22, %v14, 0
    %v25 = vsel %vm22, %v17, 0
    %27 = vmatprep.subr.mxu0 %v25
    %28 = vmatpush1.msra.mxu0 %v23
    %29 = vmatprep.subr.mxu0 0.0
    %30 = vmatpush1.msra.mxu0 0.0
    %31 = vmatprep.subr.mxu0 0.0
    %32 = vmatpush1.msra.mxu0 0.0
    %33 = vmatprep.subr.mxu0 0.0
    %34 = vmatpush1.msra.mxu0 0.0
    %35 = vmatprep.subr.mxu0 0.0
    %36 = vmatpush1.msra.mxu0 0.0
    %37 = vmatprep.subr.mxu0 0.0
    %38 = vmatpush1.msra.mxu0 0.0
    %39 = vmatprep.subr.mxu0 0.0
    %40 = vmatpush1.msra.mxu0 0.0
    %41 = vmatprep.subr.mxu0 0.0
    %42 = vmatpush1.msra.mxu0 0.0
    %43 = vmatprep.subr.mxu0 0.0
    %44 = vmatpush1.msra.mxu0 0.0
    %45 = vmatprep.subr.mxu0 0.0
    %46 = vmatpush1.msra.mxu0 0.0
    %47 = vmatprep.subr.mxu0 0.0
    %48 = vmatpush1.msra.mxu0 0.0
    %49 = vmatprep.subr.mxu0 0.0
    %50 = vmatpush1.msra.mxu0 0.0
    %51 = vmatprep.subr.mxu0 0.0
    %52 = vmatpush1.msra.mxu0 0.0
    %53 = vmatprep.subr.mxu0 0.0
    %54 = vmatpush1.msra.mxu0 0.0
    %55 = vmatprep.subr.mxu0 0.0
    %56 = vmatpush1.msra.mxu0 0.0
    %57 = vmatprep.subr.mxu0 0.0
    %58 = vmatpush1.msra.mxu0 0.0
    %59 = vmatprep.subr.mxu0 0.0
    %60 = vmatpush1.msra.mxu0 0.0
    %61 = vmatprep.subr.mxu0 0.0
    %62 = vmatpush1.msra.mxu0 0.0
    %63 = vmatprep.subr.mxu0 0.0
    %64 = vmatpush1.msra.mxu0 0.0
    %65 = vmatprep.subr.mxu0 0.0
    %66 = vmatpush1.msra.mxu0 0.0
    %67 = vmatprep.subr.mxu0 0.0
    %68 = vmatpush1.msra.mxu0 0.0
    %69 = vmatprep.subr.mxu0 0.0
    %70 = vmatpush1.msra.mxu0 0.0
    %71 = vmatprep.subr.mxu0 0.0
    %72 = vmatpush1.msra.mxu0 0.0
    %73 = vmatprep.subr.mxu0 0.0
    %74 = vmatpush1.msra.mxu0 0.0
    %75 = vmatprep.subr.mxu0 0.0
    %76 = vmatpush1.msra.mxu0 0.0
    %77 = vmatprep.subr.mxu0 0.0
    %78 = vmatpush1.msra.mxu0 0.0
    %79 = vmatprep.subr.mxu0 0.0
    %80 = vmatpush1.msra.mxu0 0.0
    %81 = vmatprep.subr.mxu0 0.0
    %82 = vmatpush1.msra.mxu0 0.0
    %83 = vmatprep.subr.mxu0 0.0
    %84 = vmatpush1.msra.mxu0 0.0
    %85 = vmatprep.subr.mxu0 0.0
    %86 = vmatpush1.msra.mxu0 0.0
    %87 = vmatprep.subr.mxu0 0.0
    %88 = vmatpush1.msra.mxu0 0.0
    %89 = vmatprep.subr.mxu0 0.0
    %90 = vmatpush1.msra.mxu0 0.0
    %91 = vmatprep.mubr.f32.mxu0 0.0
    %92 = vmatmul.mubr.f32.gmra.mrb[0].mxu0 %v20
    %v93 = vpop.f32.mrb[0].mxu0
    %v94 = vadd.f32 0.0, %v93
    %v95 = vpop.f32.mrb[0].mxu0
    %v96 = vadd.f32 0.0, %v95
    %97 = vdwg.mxu0
    %v99 = vcombine.high %v15, %v15
    %v101 = vsel %vm18, %v13, 0
    %v103 = vsel %vm22, %v15, 0
    %v105 = vsel %vm22, %v99, 0
    %107 = vmatprep.subr.mxu0 %v105
    %108 = vmatpush1.msra.mxu0 %v103
    %109 = vmatprep.subr.mxu0 0.0
    %110 = vmatpush1.msra.mxu0 0.0
    %111 = vmatprep.subr.mxu0 0.0
    %112 = vmatpush1.msra.mxu0 0.0
    %113 = vmatprep.subr.mxu0 0.0
    %114 = vmatpush1.msra.mxu0 0.0
    %115 = vmatprep.subr.mxu0 0.0
    %116 = vmatpush1.msra.mxu0 0.0
    %117 = vmatprep.subr.mxu0 0.0
    %118 = vmatpush1.msra.mxu0 0.0
    %119 = vmatprep.subr.mxu0 0.0
    %120 = vmatpush1.msra.mxu0 0.0
    %121 = vmatprep.subr.mxu0 0.0
    %122 = vmatpush1.msra.mxu0 0.0
    %123 = vmatprep.subr.mxu0 0.0
    %124 = vmatpush1.msra.mxu0 0.0
    %125 = vmatprep.subr.mxu0 0.0
    %126 = vmatpush1.msra.mxu0 0.0
    %127 = vmatprep.subr.mxu0 0.0
    %128 = vmatpush1.msra.mxu0 0.0
    %129 = vmatprep.subr.mxu0 0.0
    %130 = vmatpush1.msra.mxu0 0.0
    %131 = vmatprep.subr.mxu0 0.0
    %132 = vmatpush1.msra.mxu0 0.0
    %133 = vmatprep.subr.mxu0 0.0
    %134 = vmatpush1.msra.mxu0 0.0
    %135 = vmatprep.subr.mxu0 0.0
    %136 = vmatpush1.msra.mxu0 0.0
    %137 = vmatprep.subr.mxu0 0.0
    %138 = vmatpush1.msra.mxu0 0.0
    %139 = vmatprep.subr.mxu0 0.0
    %140 = vmatpush1.msra.mxu0 0.0
    %141 = vmatprep.subr.mxu0 0.0
    %142 = vmatpush1.msra.mxu0 0.0
    %143 = vmatprep.subr.mxu0 0.0
    %144 = vmatpush1.msra.mxu0 0.0
    %145 = vmatprep.subr.mxu0 0.0
    %146 = vmatpush1.msra.mxu0 0.0
    %147 = vmatprep.subr.mxu0 0.0
    %148 = vmatpush1.msra.mxu0 0.0
    %149 = vmatprep.subr.mxu0 0.0
    %150 = vmatpush1.msra.mxu0 0.0
    %151 = vmatprep.subr.mxu0 0.0
    %152 = vmatpush1.msra.mxu0 0.0
    %153 = vmatprep.subr.mxu0 0.0
    %154 = vmatpush1.msra.mxu0 0.0
    %155 = vmatprep.subr.mxu0 0.0
    %156 = vmatpush1.msra.mxu0 0.0
    %157 = vmatprep.subr.mxu0 0.0
    %158 = vmatpush1.msra.mxu0 0.0
    %159 = vmatprep.subr.mxu0 0.0
    %160 = vmatpush1.msra.mxu0 0.0
    %161 = vmatprep.subr.mxu0 0.0
    %162 = vmatpush1.msra.mxu0 0.0
    %163 = vmatprep.subr.mxu0 0.0
    %164 = vmatpush1.msra.mxu0 0.0
    %165 = vmatprep.subr.mxu0 0.0
    %166 = vmatpush1.msra.mxu0 0.0
    %167 = vmatprep.subr.mxu0 0.0
    %168 = vmatpush1.msra.mxu0 0.0
    %169 = vmatprep.subr.mxu0 0.0
    %170 = vmatpush1.msra.mxu0 0.0
    %171 = vmatprep.mubr.f32.mxu0 0.0
    %172 = vmatmul.mubr.f32.gmra.mrb[0].mxu0 %v101
    %v173 = vpop.f32.mrb[0].mxu0
    %v174 = vadd.f32 0.0, %v173
    %v175 = vpop.f32.mrb[0].mxu0
    %v176 = vadd.f32 0.0, %v175
    %177 = vdwg.mxu0
    %178 = vst [vmem:[#allocation2] sm:$0xff] %v94
    %179 = vst [vmem:[#allocation2 + $0x8] sm:$0xff] %v96
    %180 = vst [vmem:[#allocation2 + $0x10] sm:$0xff] %v174
    %181 = vst [vmem:[#allocation2 + $0x18] sm:$0xff] %v176
    // Predicated region
    $region10: #{tpu_custom_call.1} parent=1 // pred_check
      _
    $region11: #{tpu_custom_call.1} parent=1 // pred_check_branch
      %183 = sbr.rel (0) target = $region13
    $region12: #{tpu_custom_call.1} parent=1 // pred_region
      %s185 = ssub.s32 512, 512
      %186 = vsyncadd [#allocation3], %s185
      %s187 = sshll.u32 [#allocation2], 4
      %s188 = int_to_ptr.vmem [resolvable:$true] %s187
      %193 = dma.vmem_to_hbm [thread:$0]  %s188, 512, %s2, [#allocation3], 256, 256, 16
    $region13: #{tpu_custom_call.1} parent=1 // pred_fallthru
      _
    // Predicated region
    $region14: #{tpu_custom_call.1} parent=1 // pred_check
      _
    $region15: #{tpu_custom_call.1} parent=1 // pred_check_branch
      %195 = sbr.rel (0) target = $region17
    $region16: #{tpu_custom_call.1} parent=1 // pred_region
      %196 = dma.done [#allocation3], 512
    $region17: #{tpu_custom_call.1} parent=1 // pred_fallthru
      _
    %197 = vsyncpa [#allocation3], 1

</llo_original>
